<compile_context>
chip_gen: v6e
topology: v6e:2x2x1
jax: 0.10.0
libtpu: 0.0.40
codegen_flags: <defaults>
</compile_context>

<pallas_src>
import jax
import jax.numpy as jnp
from jax.experimental import pallas as pl
from jax.experimental.pallas import tpu as pltpu

EPS = 1e-5
_TARGET_BLOCK_BYTES = 4 * 1024 * 1024   # ~4 MiB tiles: amortize per-step overhead
_FUSED_BATCH_MAX_BYTES = 4 * 1024 * 1024  # single-pass batch norm when x fits


# ---------------------------------------------------------------------------
# Tile-size / VMEM helpers
# ---------------------------------------------------------------------------
def _sublane_multiple(dtype):
    # f32 -> 8 sublanes per vreg row; bf16/f16 pack 16.
    return 16 if jnp.dtype(dtype).itemsize == 2 else 8


def _vmem_limit_bytes(need_bytes):
    # Floor at the common 32 MiB scoped default (lifts v5e's 16 MiB default);
    # cap at 48 MiB to leave headroom inside v7x's 64 MiB physical VMEM.
    return int(min(48 << 20, max(32 << 20, int(need_bytes))))


def _row_tile(n_rows, n_cols, dtype, override=None):
    """Row tile so each (tile, E) block is ~_TARGET_BLOCK_BYTES; sublane aligned."""
    mult = _sublane_multiple(dtype)
    itemsize = jnp.dtype(dtype).itemsize
    if override is not None:
        tile = max(1, min(int(override), n_rows))
    else:
        tile = max(mult, _TARGET_BLOCK_BYTES // max(n_cols * itemsize, 1))
        # Guarantee >= 2 grid steps when possible so the "parallel" grid axis
        # can shard across v7x's two TensorCores.
        if n_rows >= 2 * mult:
            tile = min(tile, n_rows // 2)
    tile = min(tile, n_rows)
    if tile >= n_rows:
        return n_rows  # single full block (block == array dim is always legal)
    return max(mult, (tile // mult) * mult)


def _instance_tiles(B, N, E, dtype):
    """(te, tb): E (lane) tile and batch tile for instance norm blocks."""
    itemsize = jnp.dtype(dtype).itemsize
    if E < 128 or E % 128 != 0:
        te = E  # full dim (legal); lane-sparse only when E < 128
    else:
        cands = [c for c in range(128, E + 1, 128) if E % c == 0]
        te = cands[0]
        for c in cands:
            if N * c * itemsize <= _TARGET_BLOCK_BYTES:
                te = c
        # TODO(synk): for extremely long N even te=128 exceeds the block budget;
        # that would need a two-pass (sum/sumsq over N tiles + affine) design.
    slab = max(N * te * itemsize, 1)
    tb = max(1, _TARGET_BLOCK_BYTES // slab)
    tb = min(tb, B)
    # Keep >= 2 grid steps for v7x megacore when the E axis is not tiled.
    if (E // te) <= 1 and B >= 2:
        tb = min(tb, max(1, B // 2))
    return te, tb


# ---------------------------------------------------------------------------
# Kernels
# ---------------------------------------------------------------------------
def _layer_norm_kernel(x_ref, g_ref, b_ref, o_ref):
    # x_ref: (TR, E); normalize each row over E.
    x = x_ref[...].astype(jnp.float32)
    mean = jnp.mean(x, axis=-1, keepdims=True)
    var = jnp.mean((x - mean) ** 2, axis=-1, keepdims=True)
    inv = jax.lax.rsqrt(var + EPS)
    o_ref[...] = ((x - mean) * inv * g_ref[...] + b_ref[...]).astype(o_ref.dtype)


def _affine_kernel(x_ref, scale_ref, shift_ref, o_ref):
    # x_ref: (TR, E); y = x*scale + shift with per-feature (1, E) scale/shift.
    x = x_ref[...].astype(jnp.float32)
    o_ref[...] = (x * scale_ref[...] + shift_ref[...]).astype(o_ref.dtype)


def _fused_batch_kernel(x_ref, g_ref, b_ref, o_ref):
    # Whole x resident: stats over rows + normalize in one read/write.
    x = x_ref[...].astype(jnp.float32)
    mean = jnp.mean(x, axis=0, keepdims=True)
    var = jnp.mean((x - mean) ** 2, axis=0, keepdims=True)
    scale = g_ref[...] * jax.lax.rsqrt(var + EPS)
    shift = b_ref[...] - mean * scale
    o_ref[...] = (x * scale + shift).astype(o_ref.dtype)


def _make_batch_stats_kernel(total_rows, tile_rows):
    """Fused stats pass: Chan-merged mean/M2 over row tiles -> (mean, var)."""

    def kernel(x_ref, mean_ref, var_ref):
        i = pl.program_id(0)
        last = pl.num_programs(0) - 1
        tr = x_ref.shape[0]
        x = x_ref[...].astype(jnp.float32)

        # Mask rows beyond total_rows in the (possibly partial) last tile.
        remaining = total_rows - i * tile_rows
        row_ids = jax.lax.broadcasted_iota(jnp.int32, (tr, 1), 0)
        valid = row_ids < remaining
        n_b = jnp.minimum(remaining, tile_rows).astype(jnp.float32)

        x0 = jnp.where(valid, x, 0.0)
        mean_b = jnp.sum(x0, axis=0, keepdims=True) / n_b           # (1, E)
        xc = jnp.where(valid, x - mean_b, 0.0)
        m2_b = jnp.sum(xc * xc, axis=0, keepdims=True)               # (1, E)

        @pl.when(i == 0)
        def _():
            mean_ref[...] = mean_b
            var_ref[...] = m2_b

        @pl.when(i > 0)
        def _():
            # Chan merge of (count, mean, M2); all previous tiles were full.
            n_a = (i * tile_rows).astype(jnp.float32)
            n_ab = n_a + n_b
            delta = mean_b - mean_ref[...]
            mean_ref[...] = mean_ref[...] + delta * (n_b / n_ab)
            var_ref[...] = var_ref[...] + m2_b + delta * delta * (n_a * n_b / n_ab)

        @pl.when(i == last)
        def _():
            var_ref[...] = var_ref[...] / jnp.float32(total_rows)   # biased var

    return kernel


def _instance_norm_kernel(x_ref, g_ref, b_ref, o_ref):
    # x_ref: (TB, N, TE); normalize over the N axis per (batch, channel).
    x = x_ref[...].astype(jnp.float32)
    mean = jnp.mean(x, axis=1, keepdims=True)
    var = jnp.mean((x - mean) ** 2, axis=1, keepdims=True)
    scale = jax.lax.rsqrt(var + EPS) * g_ref[...]   # (TB, 1, TE) — cheap
    shift = b_ref[...] - mean * scale               # fold affine -> 2 VPU ops/elem
    o_ref[...] = (x * scale + shift).astype(o_ref.dtype)


# ---------------------------------------------------------------------------
# Tiled row-wise pallas_call (shared by layer norm & batch-norm affine pass)
# ---------------------------------------------------------------------------
def _tiled_rowwise_call(kernel, x2, p1, p2, tile_rows, *, flops_per_elem, trans_per_row):
    R, E = x2.shape
    tr = tile_rows
    itemsize = jnp.dtype(x2.dtype).itemsize
    need = 4 * tr * E * itemsize + 3 * tr * E * 4 + (1 << 20)
    cost = pl.CostEstimate(
        flops=int(flops_per_elem * R * E),
        transcendentals=int(trans_per_row * R),
        bytes_accessed=int(2 * R * E * itemsize + 2 * E * 4),
    )
    return pl.pallas_call(
        kernel,
        out_shape=jax.ShapeDtypeStruct((R, E), x2.dtype),
        grid_spec=pltpu.PrefetchScalarGridSpec(
            num_scalar_prefetch=0,
            grid=(pl.cdiv(R, tr),),
            in_specs=[
                pl.BlockSpec((tr, E), lambda i: (i, 0)),
                pl.BlockSpec((1, p1.shape[1]), lambda i: (0, 0)),
                pl.BlockSpec((1, p2.shape[1]), lambda i: (0, 0)),
            ],
            out_specs=pl.BlockSpec((tr, E), lambda i: (i, 0)),
        ),
        compiler_params=pltpu.CompilerParams(
            dimension_semantics=("parallel",),
            vmem_limit_bytes=_vmem_limit_bytes(need),
        ),
        cost_estimate=cost,
    )(x2, p1, p2)


def _batch_stats(x2, tile_rows):
    """Single-read fused stats pass -> (mean, var) of shape (1, E), f32."""
    R, E = x2.shape
    itemsize = jnp.dtype(x2.dtype).itemsize
    need = 2 * tile_rows * E * itemsize + 3 * tile_rows * E * 4 + (1 << 20)
    cost = pl.CostEstimate(
        flops=int(5 * R * E),
        transcendentals=0,
        bytes_accessed=int(R * E * itemsize + 2 * E * 4),
    )
    return pl.pallas_call(
        _make_batch_stats_kernel(R, tile_rows),
        out_shape=(jax.ShapeDtypeStruct((1, E), jnp.float32),
                   jax.ShapeDtypeStruct((1, E), jnp.float32)),
        grid_spec=pltpu.PrefetchScalarGridSpec(
            num_scalar_prefetch=0,
            grid=(pl.cdiv(R, tile_rows),),
            in_specs=[pl.BlockSpec((tile_rows, E), lambda i: (i, 0))],
            out_specs=[pl.BlockSpec((1, E), lambda i: (0, 0)),
                       pl.BlockSpec((1, E), lambda i: (0, 0))],
        ),
        compiler_params=pltpu.CompilerParams(
            dimension_semantics=("arbitrary",),
            vmem_limit_bytes=_vmem_limit_bytes(need),
        ),
        cost_estimate=cost,
    )(x2)


# ---------------------------------------------------------------------------
# Module forward
# ---------------------------------------------------------------------------
def normalization_forward(x, gamma, beta, normalization="instance", *,
                          tile_rows=None,
                          batch_fused_max_bytes=_FUSED_BATCH_MAX_BYTES):
    """Forward pass of the `Normalization` module.

    x     : (B, N, E)
    gamma : (E,) affine scale
    beta  : (E,) affine shift
    """
    B, N, E = x.shape
    g = gamma.reshape(1, E).astype(jnp.float32)
    b = beta.reshape(1, E).astype(jnp.float32)
    itemsize = jnp.dtype(x.dtype).itemsize

    if normalization == "layer":
        x2 = x.reshape(B * N, E)
        tr = _row_tile(B * N, E, x.dtype, tile_rows)
        out = _tiled_rowwise_call(
            _layer_norm_kernel, x2, g, b, tr, flops_per_elem=7, trans_per_row=1
        )
        return out.reshape(B, N, E)

    if normalization == "batch":
        # TODO(synk): training-mode batch statistics only (no running_mean/var
        # update, no eval mode) — matches the reference module's training forward.
        R = B * N
        x2 = x.reshape(R, E)

        if R * E * itemsize <= batch_fused_max_bytes:
            # Fully fused small-x path: stats + normalize in one read + write.
            need = 4 * R * E * itemsize + 3 * R * E * 4 + (1 << 20)
            cost = pl.CostEstimate(
                flops=int(8 * R * E),
                transcendentals=int(E),
                bytes_accessed=int(2 * R * E * itemsize + 2 * E * 4),
            )
            out = pl.pallas_call(
                _fused_batch_kernel,
                out_shape=jax.ShapeDtypeStruct((R, E), x.dtype),
                grid_spec=pltpu.PrefetchScalarGridSpec(
                    num_scalar_prefetch=0,
                    grid=(1,),
                    in_specs=[
                        pl.BlockSpec((R, E), lambda i: (0, 0)),
                        pl.BlockSpec((1, E), lambda i: (0, 0)),
                        pl.BlockSpec((1, E), lambda i: (0, 0)),
                    ],
                    out_specs=pl.BlockSpec((R, E), lambda i: (0, 0)),
                ),
                compiler_params=pltpu.CompilerParams(
                    dimension_semantics=("arbitrary",),
                    vmem_limit_bytes=_vmem_limit_bytes(need),
                ),
                cost_estimate=cost,
            )(x2, g, b)
            return out.reshape(B, N, E)

        # Two-pass large path: fused Pallas stats (1 read) + tiled affine
        # (1 read + 1 write).  Scale/shift folding happens on tiny (1, E) arrays.
        tr_stats = _row_tile(R, E, x.dtype, tile_rows)
        mean, var = _batch_stats(x2, tr_stats)
        scale = g * jax.lax.rsqrt(var + EPS)
        shift = b - mean * scale

        xa, sa, sha = x2, scale, shift
        if E < 128:
            # Lane-dense affine layout: (R, E) -> (R/k, k*E) so stores are not
            # masked vst.msk.  Pure affine, so per-feature grouping is intact.
            k = -(-128 // E)
            if R % k == 0:
                xa = x2.reshape(R // k, k * E)
                sa = jnp.tile(scale, (1, k))
                sha = jnp.tile(shift, (1, k))
        Ra, Ea = xa.shape
        tr_aff = _row_tile(Ra, Ea, x.dtype, tile_rows)
        out = _tiled_rowwise_call(
            _affine_kernel, xa, sa, sha, tr_aff, flops_per_elem=2, trans_per_row=0
        )
        return out.reshape(B, N, E)

    if normalization == "instance":
        te, tb = _instance_tiles(B, N, E, x.dtype)
        g3 = g.reshape(1, 1, E)
        b3 = b.reshape(1, 1, E)
        block_elems = tb * N * te
        need = 4 * block_elems * itemsize + 3 * block_elems * 4 + (1 << 20)
        cost = pl.CostEstimate(
            flops=int(7 * B * N * E),
            transcendentals=int(B * E),
            bytes_accessed=int(2 * B * N * E * itemsize + 2 * E * 4),
        )
        return pl.pallas_call(
            _instance_norm_kernel,
            out_shape=jax.ShapeDtypeStruct((B, N, E), x.dtype),
            grid_spec=pltpu.PrefetchScalarGridSpec(
                num_scalar_prefetch=0,
                grid=(pl.cdiv(B, tb), E // te),
                in_specs=[
                    pl.BlockSpec((tb, N, te), lambda bi, ei: (bi, 0, ei)),
                    pl.BlockSpec((1, 1, te), lambda bi, ei: (0, 0, ei)),
                    pl.BlockSpec((1, 1, te), lambda bi, ei: (0, 0, ei)),
                ],
                out_specs=pl.BlockSpec((tb, N, te), lambda bi, ei: (bi, 0, ei)),
            ),
            compiler_params=pltpu.CompilerParams(
                dimension_semantics=("parallel", "parallel"),
                vmem_limit_bytes=_vmem_limit_bytes(need),
            ),
            cost_estimate=cost,
        )(x, g3, b3)

    # normalizer is None -> identity
    return x


# ---------------------------------------------------------------------------
# Pure-JAX references (for verification)
# ---------------------------------------------------------------------------
def _ref(x, gamma, beta, normalization):
    B, N, E = x.shape
    xf = x.astype(jnp.float32)
    if normalization == "layer":
        m = jnp.mean(xf, axis=-1, keepdims=True)
        v = jnp.mean((xf - m) ** 2, axis=-1, keepdims=True)
        return ((xf - m) * jax.lax.rsqrt(v + EPS) * gamma + beta).astype(x.dtype)
    if normalization == "batch":
        x2 = xf.reshape(B * N, E)
        m = jnp.mean(x2, axis=0, keepdims=True)
        v = jnp.mean((x2 - m) ** 2, axis=0, keepdims=True)
        y = (x2 - m) * jax.lax.rsqrt(v + EPS) * gamma + beta
        return y.reshape(B, N, E).astype(x.dtype)
    if normalization == "instance":
        m = jnp.mean(xf, axis=1, keepdims=True)
        v = jnp.mean((xf - m) ** 2, axis=1, keepdims=True)
        return ((xf - m) * jax.lax.rsqrt(v + EPS) * gamma + beta).astype(x.dtype)
    return x


# ---------------------------------------------------------------------------
if __name__ == "__main__":
    import numpy as np

    key = jax.random.PRNGKey(0)
    ok = True

    # (B, N, E, forced row tile, dtype)
    test_cases = [
        (2, 8, 32, None, jnp.float32),    # small shape; fused batch path
        (2, 8, 32, 8, jnp.float32),       # forced multi-tile row pipeline
        (2, 7, 32, 8, jnp.float32),       # partial last row tile (14 rows / 8)
        (2, 24, 128, None, jnp.float32),  # lane-dense E, auto >=2 grid steps
        (2, 16, 128, None, jnp.bfloat16), # bf16 sublane packing
    ]
    for idx, (B, N, E, tr, dt) in enumerate(test_cases):
        kx, kg, kb, key = jax.random.split(key, 4)
        x = jax.random.normal(kx, (B, N, E), dtype=jnp.float32).astype(dt)
        gamma = 1.0 + 0.05 * jax.random.normal(kg, (E,), dtype=jnp.float32)
        beta = 0.1 * jax.random.normal(kb, (E,), dtype=jnp.float32)
        atol = 3e-2 if dt == jnp.bfloat16 else 1e-4

        runs = [("instance", {}), ("layer", {}), ("batch", {}),
                # force the two-pass (stats kernel + affine) batch path too
                ("batch", {"batch_fused_max_bytes": 0})]
        for norm_type, kw in runs:
            out = normalization_forward(
                x, gamma, beta, normalization=norm_type, tile_rows=tr, **kw
            )
            out = jax.block_until_ready(out)
            ref = _ref(x, gamma, beta, norm_type)
            o = np.asarray(out.astype(jnp.float32))
            r = np.asarray(ref.astype(jnp.float32))
            if not np.allclose(o, r, atol=atol, rtol=atol):
                ok = False
                print(f"MISMATCH case={idx} type={norm_type} kw={kw} "
                      f"shape={(B, N, E)} tile={tr} dtype={dt}")

    # identity path (normalizer is None)
    x = jax.random.normal(key, (2, 8, 32), dtype=jnp.float32)
    ident = normalization_forward(
        x, jnp.ones(32, jnp.float32), jnp.zeros(32, jnp.float32), None
    )
    if not np.allclose(np.asarray(ident), np.asarray(x)):
        ok = False
        print("MISMATCH identity")

    if ok:
        print("KERNEL_OK")
</pallas_src>

<mosaic_0001>
module attributes {stable_mosaic.version = 11 : i64} {
  func.func @_instance_norm_kernel(%arg0: i32, %arg1: i32, %arg2: memref<1x8x32xf32, #tpu.memory_space<vmem>>, %arg3: memref<1x1x32xf32, #tpu.memory_space<vmem>>, %arg4: memref<1x1x32xf32, #tpu.memory_space<vmem>>, %arg5: memref<1x8x32xf32, #tpu.memory_space<vmem>>) attributes {dimension_semantics = [#tpu.dimension_semantics<parallel>, #tpu.dimension_semantics<parallel>], iteration_bounds = array<i64: 2, 1>, scalar_prefetch = 0 : i64, scratch_operands = 0 : i64, tpu.core_type = #tpu.core_type<tc>, window_params = [{transform_indices = @transform_0, window_bounds = array<i64: 1, 8, 32>}, {transform_indices = @transform_1, window_bounds = array<i64: 1, 1, 32>}, {transform_indices = @transform_2, window_bounds = array<i64: 1, 1, 32>}, {transform_indices = @transform_3, window_bounds = array<i64: 1, 8, 32>}]} {
    %c0 = arith.constant 0 : index
    %c0_0 = arith.constant 0 : index
    %c0_1 = arith.constant 0 : index
    %0 = vector.load %arg2[%c0, %c0_0, %c0_1] : memref<1x8x32xf32, #tpu.memory_space<vmem>>, vector<1x8x32xf32>
    %cst = arith.constant dense<0.000000e+00> : vector<1x32xf32>
    %1 = vector.multi_reduction <add>, %0, %cst [1] : vector<1x8x32xf32> to vector<1x32xf32>
    %2 = vector.shape_cast %1 : vector<1x32xf32> to vector<1x1x32xf32>
    %cst_2 = arith.constant 8.000000e+00 : f32
    %3 = vector.broadcast %cst_2 : f32 to vector<1x1x32xf32>
    %4 = arith.divf %2, %3 : vector<1x1x32xf32>
    %5 = vector.broadcast %4 : vector<1x1x32xf32> to vector<1x8x32xf32>
    %6 = arith.subf %0, %5 : vector<1x8x32xf32>
    %7 = arith.mulf %6, %6 : vector<1x8x32xf32>
    %cst_3 = arith.constant dense<0.000000e+00> : vector<1x32xf32>
    %8 = vector.multi_reduction <add>, %7, %cst_3 [1] : vector<1x8x32xf32> to vector<1x32xf32>
    %9 = vector.shape_cast %8 : vector<1x32xf32> to vector<1x1x32xf32>
    %cst_4 = arith.constant 8.000000e+00 : f32
    %10 = vector.broadcast %cst_4 : f32 to vector<1x1x32xf32>
    %11 = arith.divf %9, %10 : vector<1x1x32xf32>
    %cst_5 = arith.constant 9.99999974E-6 : f32
    %12 = vector.broadcast %cst_5 : f32 to vector<1x1x32xf32>
    %13 = arith.addf %11, %12 : vector<1x1x32xf32>
    %14 = math.rsqrt %13 : vector<1x1x32xf32>
    %c0_6 = arith.constant 0 : index
    %c0_7 = arith.constant 0 : index
    %c0_8 = arith.constant 0 : index
    %15 = vector.load %arg3[%c0_6, %c0_7, %c0_8] : memref<1x1x32xf32, #tpu.memory_space<vmem>>, vector<1x1x32xf32>
    %16 = arith.mulf %14, %15 : vector<1x1x32xf32>
    %c0_9 = arith.constant 0 : index
    %c0_10 = arith.constant 0 : index
    %c0_11 = arith.constant 0 : index
    %17 = vector.load %arg4[%c0_9, %c0_10, %c0_11] : memref<1x1x32xf32, #tpu.memory_space<vmem>>, vector<1x1x32xf32>
    %18 = arith.mulf %4, %16 : vector<1x1x32xf32>
    %19 = arith.subf %17, %18 : vector<1x1x32xf32>
    %20 = vector.broadcast %16 : vector<1x1x32xf32> to vector<1x8x32xf32>
    %21 = arith.mulf %0, %20 : vector<1x8x32xf32>
    %22 = vector.broadcast %19 : vector<1x1x32xf32> to vector<1x8x32xf32>
    %23 = arith.addf %21, %22 : vector<1x8x32xf32>
    %c0_12 = arith.constant 0 : index
    %c0_13 = arith.constant 0 : index
    %c0_14 = arith.constant 0 : index
    %24 = vector.load %arg5[%c0_12, %c0_13, %c0_14] : memref<1x8x32xf32, #tpu.memory_space<vmem>>, vector<1x8x32xf32>
    tpu.vector_store %arg5[%c0_12, %c0_13, %c0_14], %23 {strides = array<i32>} : memref<1x8x32xf32, #tpu.memory_space<vmem>>, vector<1x8x32xf32>,
    return
  }
  func.func @transform_0(%arg0: i32, %arg1: i32) -> (i32, i32, i32) {
    %c0_i32 = arith.constant 0 : i32
    %c0_i32_0 = arith.constant 0 : i32
    return %arg0, %c0_i32, %arg1 : i32, i32, i32
  }
  func.func @transform_1(%arg0: i32, %arg1: i32) -> (i32, i32, i32) {
    %c0_i32 = arith.constant 0 : i32
    %c0_i32_0 = arith.constant 0 : i32
    %c0_i32_1 = arith.constant 0 : i32
    return %c0_i32, %c0_i32_0, %arg1 : i32, i32, i32
  }
  func.func @transform_2(%arg0: i32, %arg1: i32) -> (i32, i32, i32) {
    %c0_i32 = arith.constant 0 : i32
    %c0_i32_0 = arith.constant 0 : i32
    %c0_i32_1 = arith.constant 0 : i32
    return %c0_i32, %c0_i32_0, %arg1 : i32, i32, i32
  }
  func.func @transform_3(%arg0: i32, %arg1: i32) -> (i32, i32, i32) {
    %c0_i32 = arith.constant 0 : i32
    %c0_i32_0 = arith.constant 0 : i32
    return %arg0, %c0_i32, %arg1 : i32, i32, i32
  }
}

</mosaic_0001>

<llo_original>
// kernel: tpu_custom_call.1
$region0: #{tpu_custom_call.1}
  #allocation0 [shape = 'u32[]', space=smem, size = 0x4, offset = 0x4, fixed_abs, tag = 'smem constant byte address 0x4 - core index']
  #allocation1 [shape = 'u32[144,128]{1,0:T(1,128)}', space=vmem, size = 0x12000, scoped, tag = 'internal scratch']
  %s0 = inlined_call_operand.hbm [shape: f32[2,8,32], index: 0, kind: input, shape index: {}]
  %s1 = inlined_call_operand.vmem [shape: f32[1,1,32], index: 1, kind: input, shape index: {}]
  %s2 = inlined_call_operand.vmem [shape: f32[1,1,32], index: 2, kind: input, shape index: {}]
  %s3 = inlined_call_operand.hbm [shape: f32[2,8,32], index: 3, kind: output, shape index: {}]
  %s4 = sld [smem:[#allocation0]]
  $region49: #{tpu_custom_call.1} parent=0
    _
  %s6 = ssub.s32 1, %s4
  %s7 = scalar_select 0, %s6, %s4
  $region1: #{tpu_custom_call.1} parent=0
    #allocation2 [shape = 'u8[8192]{0}', space=vmem, size = 0x2000, scoped, tag = 'input window, operand 0']
    #allocation3 [shape = 's32[2]{0}', space=sflag, size = 0x8, scoped, tag = 'scoped memory for tpu_custom_call.1']
    #allocation4 [shape = 's32[2]{0}', space=sflag, size = 0x8, scoped, tag = 'scoped memory for tpu_custom_call.1']
    #allocation5 [shape = 'u8[8192]{0}', space=vmem, size = 0x2000, scoped, tag = 'output window, operand 0']
    %8 = vsyncpa [#allocation3], 0
    %s9 = scalar_lea.sflag [#allocation3], 1
    %10 = vsyncpa %s9, 0
    %11 = vsyncpa [#allocation4], 0
    %s12 = scalar_lea.sflag [#allocation4], 1
    %13 = vsyncpa %s12, 0
    loop: start=0, step=1, limit=4
    $region2: #{tpu_custom_call.1} parent=1 // loop_pre_header
      _
    $region3: #{tpu_custom_call.1} parent=1 // loop_header
      %s15 = sphi 0, %s19
      %p16 = scmp.ge.s32.totalorder %s15, 4
      %s22 = sphi 0, %s34
      %s23 = sphi 0, %s30
      %s24 = sphi 0, %s22
      %s25 = sphi 0, %s23
      %s26 = sphi 0, %s24
      %s27 = sphi 0, %s25
      %s39 = sphi 0, %s41
      %s42 = sphi 0, %s39
      %s43 = sphi 0, %s42
      %s59 = sphi 0, %s43
      %s65 = sphi 0, %s67
      %s68 = sphi 0, %s65
      %s69 = sphi 0, %s68
      %s85 = sphi 0, %s69
      %s91 = sphi 0, %s93
      %s94 = sphi 0, %s91
      %s95 = sphi 0, %s94
      %s111 = sphi 0, %s95
      %s119 = sphi 0, %s121
      %s122 = sphi 0, %s119
      %s123 = sphi 0, %s122
      %s139 = sphi 0, %s123
    $region4: #{tpu_custom_call.1} parent=1 // loop_header_branch
      %18 = sbr.rel (%p16) target = $region8
    $region5: #{tpu_custom_call.1} parent=1 // loop_body
      %s20 = ssub.s32 %s15, 1
      %s21 = ssub.s32 %s15, 2
      %s28 = sadd.s32 1, %s23
      %p29 = scmp.ge.s32.totalorder %s28, 1
      %s30 = scalar_select %p29, 0, %s28
      %s31 = sadd.s32 1, %s22
      %s32 = scalar_select %p29, %s31, %s22
      %p33 = scmp.ge.s32.totalorder %s32, 2
      %s34 = scalar_select %p33, 0, %s32
      %s35 = ssub.s32 %s22, %s34
      %s36 = ssub.s32 %s23, %s30
      %s37 = sor.u32 %s35, %s36
      %p38 = scmp.eq.s32.totalorder %s37, 0
      %s40 = sadd.s32 %s39, 1
      %s41 = scalar_select %p38, %s39, %s40
      %p44 = pneg %p38
      %p45 = scmp.eq.s32.totalorder %s15, 1
      %p46 = por %p44, %p45
      %p47 = scmp.ne.s32.totalorder %s39, %s42
      %p48 = scmp.eq.s32.totalorder %s15, 0
      %p49 = por %p47, %p48
      %p50 = scmp.ne.s32.totalorder %s39, %s42
      %p51 = scmp.eq.s32.totalorder %s20, 1
      %p52 = por %p50, %p51
      %p53 = scmp.ne.s32.totalorder %s42, %s43
      %p54 = scmp.eq.s32.totalorder %s20, 0
      %p55 = por %p53, %p54
      %p56 = scmp.ne.s32.totalorder %s42, %s43
      %p57 = scmp.eq.s32.totalorder %s21, 1
      %p58 = por %p56, %p57
      %p60 = scmp.ne.s32.totalorder %s43, %s59
      %p61 = scmp.eq.s32.totalorder %s21, 0
      %p62 = por %p60, %p61
      %s63 = ssub.s32 %s23, %s30
      %p64 = scmp.eq.s32.totalorder %s63, 0
      %s66 = sadd.s32 %s65, 1
      %s67 = scalar_select %p64, %s65, %s66
      %p70 = pneg %p64
      %p71 = scmp.eq.s32.totalorder %s15, 1
      %p72 = por %p70, %p71
      %p73 = scmp.ne.s32.totalorder %s65, %s68
      %p74 = scmp.eq.s32.totalorder %s15, 0
      %p75 = por %p73, %p74
      %p76 = scmp.ne.s32.totalorder %s65, %s68
      %p77 = scmp.eq.s32.totalorder %s20, 1
      %p78 = por %p76, %p77
      %p79 = scmp.ne.s32.totalorder %s68, %s69
      %p80 = scmp.eq.s32.totalorder %s20, 0
      %p81 = por %p79, %p80
      %p82 = scmp.ne.s32.totalorder %s68, %s69
      %p83 = scmp.eq.s32.totalorder %s21, 1
      %p84 = por %p82, %p83
      %p86 = scmp.ne.s32.totalorder %s69, %s85
      %p87 = scmp.eq.s32.totalorder %s21, 0
      %p88 = por %p86, %p87
      %s89 = ssub.s32 %s23, %s30
      %p90 = scmp.eq.s32.totalorder %s89, 0
      %s92 = sadd.s32 %s91, 1
      %s93 = scalar_select %p90, %s91, %s92
      %p96 = pneg %p90
      %p97 = scmp.eq.s32.totalorder %s15, 1
      %p98 = por %p96, %p97
      %p99 = scmp.ne.s32.totalorder %s91, %s94
      %p100 = scmp.eq.s32.totalorder %s15, 0
      %p101 = por %p99, %p100
      %p102 = scmp.ne.s32.totalorder %s91, %s94
      %p103 = scmp.eq.s32.totalorder %s20, 1
      %p104 = por %p102, %p103
      %p105 = scmp.ne.s32.totalorder %s94, %s95
      %p106 = scmp.eq.s32.totalorder %s20, 0
      %p107 = por %p105, %p106
      %p108 = scmp.ne.s32.totalorder %s94, %s95
      %p109 = scmp.eq.s32.totalorder %s21, 1
      %p110 = por %p108, %p109
      %p112 = scmp.ne.s32.totalorder %s95, %s111
      %p113 = scmp.eq.s32.totalorder %s21, 0
      %p114 = por %p112, %p113
      %s115 = ssub.s32 %s22, %s34
      %s116 = ssub.s32 %s23, %s30
      %s117 = sor.u32 %s115, %s116
      %p118 = scmp.eq.s32.totalorder %s117, 0
      %s120 = sadd.s32 %s119, 1
      %s121 = scalar_select %p118, %s119, %s120
      %p124 = pneg %p118
      %p125 = scmp.eq.s32.totalorder %s15, 1
      %p126 = por %p124, %p125
      %p127 = scmp.ne.s32.totalorder %s119, %s122
      %p128 = scmp.eq.s32.totalorder %s15, 0
      %p129 = por %p127, %p128
      %p130 = scmp.ne.s32.totalorder %s119, %s122
      %p131 = scmp.eq.s32.totalorder %s20, 1
      %p132 = por %p130, %p131
      %p133 = scmp.ne.s32.totalorder %s122, %s123
      %p134 = scmp.eq.s32.totalorder %s20, 0
      %p135 = por %p133, %p134
      %p136 = scmp.ne.s32.totalorder %s122, %s123
      %p137 = scmp.eq.s32.totalorder %s21, 1
      %p138 = por %p136, %p137
      %p140 = scmp.ne.s32.totalorder %s123, %s139
      %p141 = scmp.eq.s32.totalorder %s21, 0
      %p142 = por %p140, %p141
      %p143 = scmp.le.s32.totalorder 1, %s15
      %p144 = scmp.lt.s32.totalorder %s15, 3
      %p145 = pnand %p143, %p144
      %p146 = pneg %p145
      // Predicated region
      $region9: #{tpu_custom_call.1} parent=5 // pred_check
        _
      $region10: #{tpu_custom_call.1} parent=5 // pred_check_branch
        %148 = sbr.rel (%p145) target = $region12
      $region11: #{tpu_custom_call.1} parent=5 // pred_region
        %s149 = ssub.s32 %s15, 1
        // Predicated region
        $region13: #{tpu_custom_call.1} parent=11 // pred_check
          %p150 = pneg %p81
        $region14: #{tpu_custom_call.1} parent=11 // pred_check_branch
          %152 = sbr.rel (%p150) target = $region16
        $region15: #{tpu_custom_call.1} parent=11 // pred_region
          %p153 = scmp.lt.s32.totalorder %s25, 0
          %s154 = scalar_select %p153, %s25, 0
          %s155 = scalar_lea.vmem %s1, %s154
        $region16: #{tpu_custom_call.1} parent=11 // pred_fallthru
          _
        // Predicated region
        $region17: #{tpu_custom_call.1} parent=11 // pred_check
          %p156 = pneg %p107
        $region18: #{tpu_custom_call.1} parent=11 // pred_check_branch
          %158 = sbr.rel (%p156) target = $region20
        $region19: #{tpu_custom_call.1} parent=11 // pred_region
          %p159 = scmp.lt.s32.totalorder %s25, 0
          %s160 = scalar_select %p159, %s25, 0
          %s161 = scalar_lea.vmem %s2, %s160
        $region20: #{tpu_custom_call.1} parent=11 // pred_fallthru
          _
      $region12: #{tpu_custom_call.1} parent=5 // pred_fallthru
        _
      %p162 = scmp.lt.s32.totalorder %s15, 2
      // Predicated region
      $region21: #{tpu_custom_call.1} parent=5 // pred_check
        %p163 = pneg %p162
      $region22: #{tpu_custom_call.1} parent=5 // pred_check_branch
        %165 = sbr.rel (%p163) target = $region24
      $region23: #{tpu_custom_call.1} parent=5 // pred_region
        // Predicated region
        $region25: #{tpu_custom_call.1} parent=23 // pred_check
          %p166 = pneg %p49
        $region26: #{tpu_custom_call.1} parent=23 // pred_check_branch
          %168 = sbr.rel (%p166) target = $region28
        $region27: #{tpu_custom_call.1} parent=23 // pred_region
          %s169 = sand.u32 %s39, 1
          %s170 = scalar_lea.sflag [#allocation3], %s169
          %s171 = sand.u32 %s39, 1
          %s172 = smul.addr %s171, 8
          %s173 = scalar_lea.vmem [#allocation2], %s172
          %s175 = ssub.s32 128, 128
          %176 = vsyncadd %s170, %s175
          %s177 = sadd.s32 %s23, %s22
          %s178 = smul.addr %s177, 128
          %s179 = scalar_lea.hbm %s0, %s178
          %s181 = sshll.u32 %s173, 4
          %s182 = int_to_ptr.vmem [resolvable:$true] %s181
          %184 = dma.hbm_to_vmem [thread:$0]  %s179, 128, %s182, %s170
        $region28: #{tpu_custom_call.1} parent=23 // pred_fallthru
          _
      $region24: #{tpu_custom_call.1} parent=5 // pred_fallthru
        _
      %p185 = scmp.le.s32.totalorder 1, %s15
      %p186 = scmp.lt.s32.totalorder %s15, 3
      %p187 = pnand %p185, %p186
      %p188 = pneg %p187
      // Predicated region
      $region29: #{tpu_custom_call.1} parent=5 // pred_check
        _
      $region30: #{tpu_custom_call.1} parent=5 // pred_check_branch
        %190 = sbr.rel (%p187) target = $region32
      $region31: #{tpu_custom_call.1} parent=5 // pred_region
        %s191 = ssub.s32 %s15, 1
        %s192 = sand.u32 %s42, 1
        %s193 = scalar_lea.sflag [#allocation3], %s192
        %s194 = sand.u32 %s42, 1
        %s195 = smul.addr %s194, 8
        %s196 = scalar_lea.vmem [#allocation2], %s195
        // Predicated region
        $region33: #{tpu_custom_call.1} parent=31 // pred_check
          %p197 = pneg %p55
        $region34: #{tpu_custom_call.1} parent=31 // pred_check_branch
          %199 = sbr.rel (%p197) target = $region36
        $region35: #{tpu_custom_call.1} parent=31 // pred_region
          %200 = dma.done %s193, 128
        $region36: #{tpu_custom_call.1} parent=31 // pred_fallthru
          _
        %s201 = sand.u32 %s42, 1
        %s202 = scalar_lea.sflag [#allocation3], %s201
        %s203 = sand.u32 %s42, 1
        %s204 = smul.addr %s203, 8
        %s205 = scalar_lea.vmem [#allocation2], %s204
        %p206 = pneg %p55
        %p207 = pneg %p52
        %p208 = scmp.lt.s32.totalorder %s25, 0
        %s209 = scalar_select %p208, %s25, 0
        %s210 = scalar_lea.vmem %s1, %s209
        %p211 = pneg %p81
        %p212 = pneg %p78
        %p213 = scmp.lt.s32.totalorder %s25, 0
        %s214 = scalar_select %p213, %s25, 0
        %s215 = scalar_lea.vmem %s2, %s214
        %p216 = pneg %p107
        %p217 = pneg %p104
        %p218 = pneg %p135
        %p219 = pneg %p132
        %s220 = sand.u32 %s122, 1
        %s221 = scalar_lea.sflag [#allocation4], %s220
        %s222 = sand.u32 %s122, 1
        %s223 = smul.addr %s222, 8
        %s224 = scalar_lea.vmem [#allocation5], %s223
        %p225 = scmp.lt.s32.totalorder %s25, 0
        %s226 = scalar_select %p225, %s25, 0
        %s227 = scalar_lea.vmem %s1, %s226
        %p228 = scmp.lt.s32.totalorder %s25, 0
        %s229 = scalar_select %p228, %s25, 0
        %s230 = scalar_lea.vmem %s2, %s229
        %v231 = vld [vmem:[%s196] sm:$0xff]
        %vm232 = vcmask 261120
        %v233 = vsel %vm232, %v231, 0.0
        %v234 = vrot.slane %v233, 4
        %v235 = vadd.f32 %v233, %v234
        %v236 = vrot.slane %v235, 2
        %v237 = vadd.f32 %v235, %v236
        %v238 = vrot.slane %v237, 1
        %v239 = vadd.f32 %v237, %v238
        %v240 = vrcp.pop 8.0
        %v241 = vmul.f32 %v239, %v240
        %v242 = vsub.f32 %v231, %v241
        %v243 = vmul.f32 %v242, %v242
        %v244 = vsel %vm232, %v243, 0.0
        %v245 = vrot.slane %v244, 4
        %v246 = vadd.f32 %v244, %v245
        %v247 = vrot.slane %v246, 2
        %v248 = vadd.f32 %v246, %v247
        %v249 = vrot.slane %v248, 1
        %v250 = vadd.f32 %v248, %v249
        %v251 = vmul.f32 %v250, %v240
        %v252 = vadd.f32 %v251, 1e-05
        %v253 = vrsqrt.pop %v252
        %v254 = vld [vmem:[%s227] sm:$0x1]
        %v255 = vmul.f32 %v253, %v254
        %v256 = vld [vmem:[%s230] sm:$0x1]
        %v257 = vmul.f32 %v241, %v255
        %v258 = vsub.f32 %v256, %v257
        %v259 = vlaneseq
        %v260 = vshrl.u32 %v259, 7
        %v261 = vsub.s32 0, %v260
        %v262 = vrot.slane %v255, %v261
        %v263 = vmul.f32 %v231, %v262
        %v265 = vlaneseq
        %v266 = vshrl.u32 %v265, 7
        %v267 = vsub.s32 0, %v266
        %v268 = vrot.slane %v258, %v267
        %v270 = vadd.f32 %v263, %v268
        %271 = vst.msk [vmem:[%s224] sm:$0xff] %vm232, %v270
        %s272 = sand.u32 %s122, 1
        %s273 = scalar_lea.sflag [#allocation4], %s272
        %s274 = sand.u32 %s122, 1
        %s275 = smul.addr %s274, 8
        %s276 = scalar_lea.vmem [#allocation5], %s275
        // Predicated region
        $region37: #{tpu_custom_call.1} parent=31 // pred_check
          %p277 = pneg %p132
        $region38: #{tpu_custom_call.1} parent=31 // pred_check_branch
          %279 = sbr.rel (%p277) target = $region40
        $region39: #{tpu_custom_call.1} parent=31 // pred_region
          %s281 = ssub.s32 128, 128
          %282 = vsyncadd %s273, %s281
          %s283 = sadd.s32 %s25, %s24
          %s284 = smul.addr %s283, 128
          %s285 = scalar_lea.hbm %s3, %s284
          %s287 = sshll.u32 %s276, 4
          %s288 = int_to_ptr.vmem [resolvable:$true] %s287
          %290 = dma.vmem_to_hbm [thread:$0]  %s288, 128, %s285, %s273
        $region40: #{tpu_custom_call.1} parent=31 // pred_fallthru
          _
      $region32: #{tpu_custom_call.1} parent=5 // pred_fallthru
        _
      %p291 = scmp.le.s32.totalorder 2, %s15
      // Predicated region
      $region41: #{tpu_custom_call.1} parent=5 // pred_check
        %p292 = pneg %p291
      $region42: #{tpu_custom_call.1} parent=5 // pred_check_branch
        %294 = sbr.rel (%p292) target = $region44
      $region43: #{tpu_custom_call.1} parent=5 // pred_region
        %s295 = ssub.s32 %s15, 2
        // Predicated region
        $region45: #{tpu_custom_call.1} parent=43 // pred_check
          %p296 = pneg %p138
        $region46: #{tpu_custom_call.1} parent=43 // pred_check_branch
          %298 = sbr.rel (%p296) target = $region48
        $region47: #{tpu_custom_call.1} parent=43 // pred_region
          %s299 = sand.u32 %s123, 1
          %s300 = scalar_lea.sflag [#allocation4], %s299
          %s301 = sand.u32 %s123, 1
          %s302 = smul.addr %s301, 8
          %s303 = scalar_lea.vmem [#allocation5], %s302
          %304 = dma.done %s300, 128
        $region48: #{tpu_custom_call.1} parent=43 // pred_fallthru
          _
      $region44: #{tpu_custom_call.1} parent=5 // pred_fallthru
        _
    $region6: #{tpu_custom_call.1} parent=1 // loop_footer
      %s19 = sadd.s32 1, %s15
    $region7: #{tpu_custom_call.1} parent=1 // loop_footer_branch
      %14 = sbr.rel target = $region3
    $region8: #{tpu_custom_call.1} parent=1 // loop_exit
      _
    %305 = vsyncpa [#allocation3], 1
    %s306 = scalar_lea.sflag [#allocation3], 1
    %307 = vsyncpa %s306, 1
    %308 = vsyncpa [#allocation4], 1
    %s309 = scalar_lea.sflag [#allocation4], 1
    %310 = vsyncpa %s309, 1

</llo_original>
